<compile_context>
chip_gen: v5e
topology: v5e:2x2
jax: 0.10.0
libtpu: 0.0.40
codegen_flags: <defaults>
</compile_context>

<pallas_src>
import numpy as np
import jax
import jax.numpy as jnp
from jax.experimental import pallas as pl
from jax.experimental.pallas import tpu as pltpu

LEAKY_SLOPE = 0.2


def _leaky(v):
    return jnp.where(v >= 0, v, LEAKY_SLOPE * v)


def _sigmoid_eup(v):
    # EUP-friendly sigmoid: exp + approximate reciprocal, no VPU divide.
    return pl.reciprocal(1.0 + jnp.exp(-v), approx=True)


# --------------------------------------------------------------------------- #
# Pallas kernels
# --------------------------------------------------------------------------- #
def outer_product_kernel(a_ref, o_ref):
    # attr_feature.unsqueeze(-1) @ attr_feature.unsqueeze(-1)^T per row,
    # written into a lane-dense (rows, L*L) output block (row tiled over grid).
    a = a_ref[...]                               # (Rt, L)
    L = a.shape[1]
    for i in range(L):                           # static unroll
        o_ref[:, i * L:(i + 1) * L] = a[:, i:i + 1] * a


def attr_stage_kernel(pt_ref, wct_ref, bct_ref, w1t_ref, b1t_ref,
                      w2t_ref, b2t_ref, o_ref):
    # One attr_layer stage per batch element, channel-first:
    #   Conv2d(Ca,Ca,4,s=2,p=1) as (Ca,CK)@(CK,P) -> CALayer2d -> LeakyReLU(0.2)
    pt = pt_ref[0]                                                   # (CK, P)
    conv = jnp.dot(wct_ref[...], pt,
                   preferred_element_type=jnp.float32) + bct_ref[...]  # (Ca, P)
    # CALayer2d: global avg pool -> 1x1 conv -> ReLU -> 1x1 conv -> sigmoid
    avg = jnp.mean(conv, axis=1, keepdims=True)                      # (Ca, 1)
    h = jnp.maximum(
        jnp.dot(w1t_ref[...], avg, preferred_element_type=jnp.float32)
        + b1t_ref[...], 0.0)                                         # (Cr, 1)
    s = _sigmoid_eup(
        jnp.dot(w2t_ref[...], h, preferred_element_type=jnp.float32)
        + b2t_ref[...])                                              # (Ca, 1)
    o_ref[0] = _leaky(conv * s)                                      # (Ca, P)


def mask_sa_kernel(gamma_ref, pt_ref, wm_ref, bm_ref, xt_ref,
                   wqt_ref, bqt_ref, wkt_ref, bkt_ref, wvt_ref, bvt_ref,
                   o_ref):
    # Fused per batch element (channel-first):
    #   mask = sigmoid(conv3x3(cat([x, attr])));  xm = x * mask;
    #   SelfAttention(xm) (1x1 convs, softmax attention, gamma*out + xm);
    #   LeakyReLU(0.2).
    pt = pt_ref[0]                                                   # (CK2, P)
    xt = xt_ref[0]                                                   # (C, P)
    # Mask logits as VPU multiply + sublane reduce (avoids 1-wide MXU result).
    logits = jnp.sum(pt * wm_ref[...], axis=0, keepdims=True) + bm_ref[...]
    xm = xt * _sigmoid_eup(logits)                                   # (C, P)

    q = jnp.dot(wqt_ref[...], xm, preferred_element_type=jnp.float32) + bqt_ref[...]
    k = jnp.dot(wkt_ref[...], xm, preferred_element_type=jnp.float32) + bkt_ref[...]
    v = jnp.dot(wvt_ref[...], xm, preferred_element_type=jnp.float32) + bvt_ref[...]
    # energy[i, j] = q[:, i] . k[:, j]
    energy = jax.lax.dot_general(q, k, (((0,), (0,)), ((), ())),
                                 preferred_element_type=jnp.float32)  # (P, P)
    # TODO(synk): for large H*W add a flash-style KV-tiled online softmax so
    # the (P, P) score matrix fits v7x's 64 MiB VMEM.
    m = jnp.max(energy, axis=-1, keepdims=True)
    e = jnp.exp(energy - m)
    inv = pl.reciprocal(jnp.sum(e, axis=-1, keepdims=True), approx=True)
    attn = e * inv                                                   # (P, P)
    # out[c, i] = sum_j v[c, j] * attn[i, j]
    out = jax.lax.dot_general(v, attn, (((1,), (1,)), ((), ())),
                              preferred_element_type=jnp.float32)    # (C, P)
    gamma = gamma_ref[0]
    o_ref[0] = _leaky(gamma * out + xm)


# --------------------------------------------------------------------------- #
# Plain-JAX glue
# --------------------------------------------------------------------------- #
def im2col_cf(x, k, stride, pad):
    # x: (B, C, H, W) -> (B, C*k*k, Ho*Wo); per-patch feature ordered (c, dh, dw)
    B, C, H, W = x.shape
    xp = jnp.pad(x, ((0, 0), (0, 0), (pad, pad), (pad, pad)))
    Ho = (H + 2 * pad - k) // stride + 1
    Wo = (W + 2 * pad - k) // stride + 1
    cols = []
    for dh in range(k):
        for dw in range(k):
            cols.append(xp[:, :, dh:dh + stride * Ho:stride,
                           dw:dw + stride * Wo:stride])
    p = jnp.stack(cols, axis=2)                      # (B, C, k*k, Ho, Wo)
    return p.reshape(B, C * k * k, Ho * Wo), Ho, Wo


def _const_spec(arr):
    nd = arr.ndim
    return pl.BlockSpec(arr.shape, lambda *_: (0,) * nd)


def dcan_forward(x, attr_feature, params, gamma):
    B, C, H, W = x.shape
    Ca, L = attr_feature.shape[1], attr_feature.shape[2]

    # 1) attr_feature2d = outer product along the sequence axis (lane-dense).
    R = B * Ca
    if R % 8 == 0:
        Rt = 8
        while Rt * 2 <= min(R, 512) and R % (Rt * 2) == 0:
            Rt *= 2
    else:
        Rt = R
    a2 = attr_feature.reshape(R, L)
    a2d = pl.pallas_call(
        outer_product_kernel,
        out_shape=jax.ShapeDtypeStruct((R, L * L), jnp.float32),
        grid=(R // Rt,),
        in_specs=[pl.BlockSpec((Rt, L), lambda r: (r, 0))],
        out_specs=pl.BlockSpec((Rt, L * L), lambda r: (r, 0)),
        compiler_params=pltpu.CompilerParams(
            dimension_semantics=("parallel",)),
    )(a2)
    cur = a2d.reshape(B, Ca, L, L)                   # NCHW

    # 2) attr_layer stages: conv4x4/s2 + CALayer2d + LeakyReLU (channel-first).
    for (wc, bc, w1, b1, w2, b2) in params["attr_stages"]:
        wct, bct = wc.T, bc.T                        # (Ca, CK), (Ca, 1)
        w1t, b1t = w1.T, b1.T                        # (Cr, Ca), (Cr, 1)
        w2t, b2t = w2.T, b2.T                        # (Ca, Cr), (Ca, 1)
        pt, Ho, Wo = im2col_cf(cur, 4, 2, 1)
        CK, P = pt.shape[1], pt.shape[2]
        out = pl.pallas_call(
            attr_stage_kernel,
            out_shape=jax.ShapeDtypeStruct((B, Ca, P), jnp.float32),
            grid=(B,),
            in_specs=[
                pl.BlockSpec((1, CK, P), lambda b: (b, 0, 0)),
                _const_spec(wct), _const_spec(bct),
                _const_spec(w1t), _const_spec(b1t),
                _const_spec(w2t), _const_spec(b2t),
            ],
            out_specs=pl.BlockSpec((1, Ca, P), lambda b: (b, 0, 0)),
            compiler_params=pltpu.CompilerParams(
                dimension_semantics=("parallel",)),
        )(pt, wct, bct, w1t, b1t, w2t, b2t)
        cur = out.reshape(B, Ca, Ho, Wo)             # already NCHW, no transpose
    attr = cur                                       # (B, Ca, H, W)

    # 3+4) fused: mask = sigmoid(conv3x3(cat([x, attr]))); x = x*mask;
    #             SelfAttention + residual + LeakyReLU(0.2).
    cat = jnp.concatenate([x, attr], axis=1)
    pt2, Ho, Wo = im2col_cf(cat, 3, 1, 1)
    CK2, P = pt2.shape[1], pt2.shape[2]
    x_t = x.reshape(B, C, P)                         # channel-first, no transpose
    wm, bm = params["mask"]
    wq, bq, wk, bk, wv, bv = params["sa"]
    wqt, bqt = wq.T, bq.T
    wkt, bkt = wk.T, bk.T
    wvt, bvt = wv.T, bv.T
    gamma_arr = jnp.asarray(gamma, jnp.float32).reshape(1)

    out = pl.pallas_call(
        mask_sa_kernel,
        out_shape=jax.ShapeDtypeStruct((B, C, P), jnp.float32),
        grid=(B,),
        in_specs=[
            pl.BlockSpec(memory_space=pltpu.MemorySpace.SMEM),   # gamma scalar
            pl.BlockSpec((1, CK2, P), lambda b: (b, 0, 0)),
            _const_spec(wm), _const_spec(bm),
            pl.BlockSpec((1, C, P), lambda b: (b, 0, 0)),
            _const_spec(wqt), _const_spec(bqt),
            _const_spec(wkt), _const_spec(bkt),
            _const_spec(wvt), _const_spec(bvt),
        ],
        out_specs=pl.BlockSpec((1, C, P), lambda b: (b, 0, 0)),
        compiler_params=pltpu.CompilerParams(
            dimension_semantics=("parallel",)),
    )(gamma_arr, pt2, wm, bm, x_t, wqt, bqt, wkt, bkt, wvt, bvt)
    return out.reshape(B, C, Ho, Wo)                 # NCHW


# --------------------------------------------------------------------------- #
# Pure-JAX reference (same math, no Pallas) for a correctness check
# --------------------------------------------------------------------------- #
def dcan_reference(x, attr_feature, params, gamma):
    B, C, H, W = x.shape
    Ca = attr_feature.shape[1]
    a = attr_feature[:, :, :, None]
    cur = jnp.matmul(a, jnp.swapaxes(a, 2, 3))
    for (wc, bc, w1, b1, w2, b2) in params["attr_stages"]:
        pt, Ho, Wo = im2col_cf(cur, 4, 2, 1)
        patches = pt.transpose(0, 2, 1)              # (B, P, CK)
        conv = patches @ wc + bc
        avg = conv.mean(axis=1, keepdims=True)
        h = jnp.maximum(avg @ w1 + b1, 0.0)
        s = jax.nn.sigmoid(h @ w2 + b2)
        cur = _leaky(conv * s).reshape(B, Ho, Wo, Ca).transpose(0, 3, 1, 2)
    attr = cur
    cat = jnp.concatenate([x, attr], axis=1)
    pt, Ho, Wo = im2col_cf(cat, 3, 1, 1)
    patches = pt.transpose(0, 2, 1)
    wm, bm = params["mask"]
    mask = jax.nn.sigmoid(patches @ wm + bm)         # (B, P, 1)
    x_nc = x.reshape(B, C, Ho * Wo).transpose(0, 2, 1)
    xm = x_nc * mask
    wq, bq, wk, bk, wv, bv = params["sa"]
    q = xm @ wq + bq
    k = xm @ wk + bk
    v = xm @ wv + bv
    attn = jax.nn.softmax(q @ jnp.swapaxes(k, 1, 2), axis=-1)
    out = _leaky(gamma * (attn @ v) + xm)
    return out.reshape(B, Ho, Wo, C).transpose(0, 3, 1, 2)


# --------------------------------------------------------------------------- #
if __name__ == "__main__":
    B, C, Ca, L, SCALE = 2, 8, 4, 16, 1       # in_channel=8, attr_channel=4
    H = W = L // (2 ** SCALE)                 # attr spatial after downscale == x spatial

    key = jax.random.PRNGKey(0)
    ks = jax.random.split(key, 20)

    def rnd(k, shape, scale=0.1):
        return scale * jax.random.normal(k, shape, dtype=jnp.float32)

    x = jax.random.normal(ks[0], (B, C, H, W), dtype=jnp.float32)
    attr_feature = jax.random.normal(ks[1], (B, Ca, L), dtype=jnp.float32)

    Cr = Ca // 4
    attr_stages = []
    idx = 2
    for _ in range(SCALE):
        wc = rnd(ks[idx + 0], (Ca * 16, Ca))   # Conv2d(Ca,Ca,4) as (Cin*k*k, Cout)
        bc = rnd(ks[idx + 1], (1, Ca))
        w1 = rnd(ks[idx + 2], (Ca, Cr))        # CA squeeze 1x1 conv
        b1 = rnd(ks[idx + 3], (1, Cr))
        w2 = rnd(ks[idx + 4], (Cr, Ca))        # CA excite 1x1 conv
        b2 = rnd(ks[idx + 5], (1, Ca))
        attr_stages.append((wc, bc, w1, b1, w2, b2))
        idx += 6
    wm = rnd(ks[idx + 0], ((C + Ca) * 9, 1))   # attn_conv 3x3, out_channels=1
    bm = rnd(ks[idx + 1], (1, 1))
    wq = rnd(ks[idx + 2], (C, C // 8)); bq = rnd(ks[idx + 3], (1, C // 8))
    wk = rnd(ks[idx + 4], (C, C // 8)); bk = rnd(ks[idx + 5], (1, C // 8))
    wv = rnd(ks[idx + 6], (C, C));      bv = rnd(ks[idx + 7], (1, C))
    # nn.Parameter(torch.zeros(1)) at PyTorch init; nonzero here to exercise the path.
    gamma = 0.5

    params = {"attr_stages": attr_stages, "mask": (wm, bm),
              "sa": (wq, bq, wk, bk, wv, bv)}

    out = dcan_forward(x, attr_feature, params, gamma)
    jax.block_until_ready(out)

    ref = dcan_reference(x, attr_feature, params, gamma)
    np.testing.assert_allclose(np.asarray(out), np.asarray(ref),
                               rtol=2e-2, atol=2e-3)
    print("KERNEL_OK")
</pallas_src>

<mosaic_0001>
module attributes {stable_mosaic.version = 11 : i64} {
  func.func @outer_product_kernel(%arg0: i32, %arg1: memref<8x16xf32, #tpu.memory_space<vmem>>, %arg2: memref<8x256xf32, #tpu.memory_space<vmem>>) attributes {dimension_semantics = [#tpu.dimension_semantics<parallel>], iteration_bounds = array<i64: 1>, scalar_prefetch = 0 : i64, scratch_operands = 0 : i64, tpu.core_type = #tpu.core_type<tc>, window_params = [{transform_indices = @transform_0, window_bounds = array<i64: 8, 16>}, {transform_indices = @transform_1, window_bounds = array<i64: 8, 256>}]} {
    %c0 = arith.constant 0 : index
    %c0_0 = arith.constant 0 : index
    %0 = vector.load %arg1[%c0, %c0_0] : memref<8x16xf32, #tpu.memory_space<vmem>>, vector<8x16xf32>
    %1 = vector.extract_strided_slice %0 {offsets = [0, 0], sizes = [8, 1], strides = [1, 1]} : vector<8x16xf32> to vector<8x1xf32>
    %2 = vector.broadcast %1 : vector<8x1xf32> to vector<8x16xf32>
    %3 = arith.mulf %2, %0 : vector<8x16xf32>
    %c0_1 = arith.constant 0 : index
    %c0_2 = arith.constant 0 : index
    %4 = vector.load %arg2[%c0_1, %c0_2] : memref<8x256xf32, #tpu.memory_space<vmem>>, vector<8x16xf32>
    tpu.vector_store %arg2[%c0_1, %c0_2], %3 {strides = array<i32>} : memref<8x256xf32, #tpu.memory_space<vmem>>, vector<8x16xf32>,
    %5 = vector.extract_strided_slice %0 {offsets = [0, 1], sizes = [8, 1], strides = [1, 1]} : vector<8x16xf32> to vector<8x1xf32>
    %6 = vector.broadcast %5 : vector<8x1xf32> to vector<8x16xf32>
    %7 = arith.mulf %6, %0 : vector<8x16xf32>
    %c0_3 = arith.constant 0 : index
    %c16 = arith.constant 16 : index
    %8 = vector.load %arg2[%c0_3, %c16] : memref<8x256xf32, #tpu.memory_space<vmem>>, vector<8x16xf32>
    tpu.vector_store %arg2[%c0_3, %c16], %7 {strides = array<i32>} : memref<8x256xf32, #tpu.memory_space<vmem>>, vector<8x16xf32>,
    %9 = vector.extract_strided_slice %0 {offsets = [0, 2], sizes = [8, 1], strides = [1, 1]} : vector<8x16xf32> to vector<8x1xf32>
    %10 = vector.broadcast %9 : vector<8x1xf32> to vector<8x16xf32>
    %11 = arith.mulf %10, %0 : vector<8x16xf32>
    %c0_4 = arith.constant 0 : index
    %c32 = arith.constant 32 : index
    %12 = vector.load %arg2[%c0_4, %c32] : memref<8x256xf32, #tpu.memory_space<vmem>>, vector<8x16xf32>
    tpu.vector_store %arg2[%c0_4, %c32], %11 {strides = array<i32>} : memref<8x256xf32, #tpu.memory_space<vmem>>, vector<8x16xf32>,
    %13 = vector.extract_strided_slice %0 {offsets = [0, 3], sizes = [8, 1], strides = [1, 1]} : vector<8x16xf32> to vector<8x1xf32>
    %14 = vector.broadcast %13 : vector<8x1xf32> to vector<8x16xf32>
    %15 = arith.mulf %14, %0 : vector<8x16xf32>
    %c0_5 = arith.constant 0 : index
    %c48 = arith.constant 48 : index
    %16 = vector.load %arg2[%c0_5, %c48] : memref<8x256xf32, #tpu.memory_space<vmem>>, vector<8x16xf32>
    tpu.vector_store %arg2[%c0_5, %c48], %15 {strides = array<i32>} : memref<8x256xf32, #tpu.memory_space<vmem>>, vector<8x16xf32>,
    %17 = vector.extract_strided_slice %0 {offsets = [0, 4], sizes = [8, 1], strides = [1, 1]} : vector<8x16xf32> to vector<8x1xf32>
    %18 = vector.broadcast %17 : vector<8x1xf32> to vector<8x16xf32>
    %19 = arith.mulf %18, %0 : vector<8x16xf32>
    %c0_6 = arith.constant 0 : index
    %c64 = arith.constant 64 : index
    %20 = vector.load %arg2[%c0_6, %c64] : memref<8x256xf32, #tpu.memory_space<vmem>>, vector<8x16xf32>
    tpu.vector_store %arg2[%c0_6, %c64], %19 {strides = array<i32>} : memref<8x256xf32, #tpu.memory_space<vmem>>, vector<8x16xf32>,
    %21 = vector.extract_strided_slice %0 {offsets = [0, 5], sizes = [8, 1], strides = [1, 1]} : vector<8x16xf32> to vector<8x1xf32>
    %22 = vector.broadcast %21 : vector<8x1xf32> to vector<8x16xf32>
    %23 = arith.mulf %22, %0 : vector<8x16xf32>
    %c0_7 = arith.constant 0 : index
    %c80 = arith.constant 80 : index
    %24 = vector.load %arg2[%c0_7, %c80] : memref<8x256xf32, #tpu.memory_space<vmem>>, vector<8x16xf32>
    tpu.vector_store %arg2[%c0_7, %c80], %23 {strides = array<i32>} : memref<8x256xf32, #tpu.memory_space<vmem>>, vector<8x16xf32>,
    %25 = vector.extract_strided_slice %0 {offsets = [0, 6], sizes = [8, 1], strides = [1, 1]} : vector<8x16xf32> to vector<8x1xf32>
    %26 = vector.broadcast %25 : vector<8x1xf32> to vector<8x16xf32>
    %27 = arith.mulf %26, %0 : vector<8x16xf32>
    %c0_8 = arith.constant 0 : index
    %c96 = arith.constant 96 : index
    %28 = vector.load %arg2[%c0_8, %c96] : memref<8x256xf32, #tpu.memory_space<vmem>>, vector<8x16xf32>
    tpu.vector_store %arg2[%c0_8, %c96], %27 {strides = array<i32>} : memref<8x256xf32, #tpu.memory_space<vmem>>, vector<8x16xf32>,
    %29 = vector.extract_strided_slice %0 {offsets = [0, 7], sizes = [8, 1], strides = [1, 1]} : vector<8x16xf32> to vector<8x1xf32>
    %30 = vector.broadcast %29 : vector<8x1xf32> to vector<8x16xf32>
    %31 = arith.mulf %30, %0 : vector<8x16xf32>
    %c0_9 = arith.constant 0 : index
    %c112 = arith.constant 112 : index
    %32 = vector.load %arg2[%c0_9, %c112] : memref<8x256xf32, #tpu.memory_space<vmem>>, vector<8x16xf32>
    tpu.vector_store %arg2[%c0_9, %c112], %31 {strides = array<i32>} : memref<8x256xf32, #tpu.memory_space<vmem>>, vector<8x16xf32>,
    %33 = vector.extract_strided_slice %0 {offsets = [0, 8], sizes = [8, 1], strides = [1, 1]} : vector<8x16xf32> to vector<8x1xf32>
    %34 = vector.broadcast %33 : vector<8x1xf32> to vector<8x16xf32>
    %35 = arith.mulf %34, %0 : vector<8x16xf32>
    %c0_10 = arith.constant 0 : index
    %c128 = arith.constant 128 : index
    %36 = vector.load %arg2[%c0_10, %c128] : memref<8x256xf32, #tpu.memory_space<vmem>>, vector<8x16xf32>
    tpu.vector_store %arg2[%c0_10, %c128], %35 {strides = array<i32>} : memref<8x256xf32, #tpu.memory_space<vmem>>, vector<8x16xf32>,
    %37 = vector.extract_strided_slice %0 {offsets = [0, 9], sizes = [8, 1], strides = [1, 1]} : vector<8x16xf32> to vector<8x1xf32>
    %38 = vector.broadcast %37 : vector<8x1xf32> to vector<8x16xf32>
    %39 = arith.mulf %38, %0 : vector<8x16xf32>
    %c0_11 = arith.constant 0 : index
    %c144 = arith.constant 144 : index
    %40 = vector.load %arg2[%c0_11, %c144] : memref<8x256xf32, #tpu.memory_space<vmem>>, vector<8x16xf32>
    tpu.vector_store %arg2[%c0_11, %c144], %39 {strides = array<i32>} : memref<8x256xf32, #tpu.memory_space<vmem>>, vector<8x16xf32>,
    %41 = vector.extract_strided_slice %0 {offsets = [0, 10], sizes = [8, 1], strides = [1, 1]} : vector<8x16xf32> to vector<8x1xf32>
    %42 = vector.broadcast %41 : vector<8x1xf32> to vector<8x16xf32>
    %43 = arith.mulf %42, %0 : vector<8x16xf32>
    %c0_12 = arith.constant 0 : index
    %c160 = arith.constant 160 : index
    %44 = vector.load %arg2[%c0_12, %c160] : memref<8x256xf32, #tpu.memory_space<vmem>>, vector<8x16xf32>
    tpu.vector_store %arg2[%c0_12, %c160], %43 {strides = array<i32>} : memref<8x256xf32, #tpu.memory_space<vmem>>, vector<8x16xf32>,
    %45 = vector.extract_strided_slice %0 {offsets = [0, 11], sizes = [8, 1], strides = [1, 1]} : vector<8x16xf32> to vector<8x1xf32>
    %46 = vector.broadcast %45 : vector<8x1xf32> to vector<8x16xf32>
    %47 = arith.mulf %46, %0 : vector<8x16xf32>
    %c0_13 = arith.constant 0 : index
    %c176 = arith.constant 176 : index
    %48 = vector.load %arg2[%c0_13, %c176] : memref<8x256xf32, #tpu.memory_space<vmem>>, vector<8x16xf32>
    tpu.vector_store %arg2[%c0_13, %c176], %47 {strides = array<i32>} : memref<8x256xf32, #tpu.memory_space<vmem>>, vector<8x16xf32>,
    %49 = vector.extract_strided_slice %0 {offsets = [0, 12], sizes = [8, 1], strides = [1, 1]} : vector<8x16xf32> to vector<8x1xf32>
    %50 = vector.broadcast %49 : vector<8x1xf32> to vector<8x16xf32>
    %51 = arith.mulf %50, %0 : vector<8x16xf32>
    %c0_14 = arith.constant 0 : index
    %c192 = arith.constant 192 : index
    %52 = vector.load %arg2[%c0_14, %c192] : memref<8x256xf32, #tpu.memory_space<vmem>>, vector<8x16xf32>
    tpu.vector_store %arg2[%c0_14, %c192], %51 {strides = array<i32>} : memref<8x256xf32, #tpu.memory_space<vmem>>, vector<8x16xf32>,
    %53 = vector.extract_strided_slice %0 {offsets = [0, 13], sizes = [8, 1], strides = [1, 1]} : vector<8x16xf32> to vector<8x1xf32>
    %54 = vector.broadcast %53 : vector<8x1xf32> to vector<8x16xf32>
    %55 = arith.mulf %54, %0 : vector<8x16xf32>
    %c0_15 = arith.constant 0 : index
    %c208 = arith.constant 208 : index
    %56 = vector.load %arg2[%c0_15, %c208] : memref<8x256xf32, #tpu.memory_space<vmem>>, vector<8x16xf32>
    tpu.vector_store %arg2[%c0_15, %c208], %55 {strides = array<i32>} : memref<8x256xf32, #tpu.memory_space<vmem>>, vector<8x16xf32>,
    %57 = vector.extract_strided_slice %0 {offsets = [0, 14], sizes = [8, 1], strides = [1, 1]} : vector<8x16xf32> to vector<8x1xf32>
    %58 = vector.broadcast %57 : vector<8x1xf32> to vector<8x16xf32>
    %59 = arith.mulf %58, %0 : vector<8x16xf32>
    %c0_16 = arith.constant 0 : index
    %c224 = arith.constant 224 : index
    %60 = vector.load %arg2[%c0_16, %c224] : memref<8x256xf32, #tpu.memory_space<vmem>>, vector<8x16xf32>
    tpu.vector_store %arg2[%c0_16, %c224], %59 {strides = array<i32>} : memref<8x256xf32, #tpu.memory_space<vmem>>, vector<8x16xf32>,
    %61 = vector.extract_strided_slice %0 {offsets = [0, 15], sizes = [8, 1], strides = [1, 1]} : vector<8x16xf32> to vector<8x1xf32>
    %62 = vector.broadcast %61 : vector<8x1xf32> to vector<8x16xf32>
    %63 = arith.mulf %62, %0 : vector<8x16xf32>
    %c0_17 = arith.constant 0 : index
    %c240 = arith.constant 240 : index
    %64 = vector.load %arg2[%c0_17, %c240] : memref<8x256xf32, #tpu.memory_space<vmem>>, vector<8x16xf32>
    tpu.vector_store %arg2[%c0_17, %c240], %63 {strides = array<i32>} : memref<8x256xf32, #tpu.memory_space<vmem>>, vector<8x16xf32>,
    return
  }
  func.func @transform_0(%arg0: i32) -> (i32, i32) {
    %c0_i32 = arith.constant 0 : i32
    %c0_i32_0 = arith.constant 0 : i32
    return %arg0, %c0_i32 : i32, i32
  }
  func.func @transform_1(%arg0: i32) -> (i32, i32) {
    %c0_i32 = arith.constant 0 : i32
    %c0_i32_0 = arith.constant 0 : i32
    return %arg0, %c0_i32 : i32, i32
  }
}

</mosaic_0001>

<llo_original>
// kernel: tpu_custom_call.1
$region0: #{tpu_custom_call.1}
  #allocation0 [shape = 'u32[]', space=smem, size = 0x4, offset = 0x4, fixed_abs, tag = 'smem constant byte address 0x4 - core index']
  #allocation1 [shape = 'u32[72,128]{1,0:T(1,128)}', space=vmem, size = 0x9000, scoped, tag = 'internal scratch']
  %s0 = inlined_call_operand.hbm [shape: f32[8,16], index: 0, kind: input, shape index: {}]
  %s1 = inlined_call_operand.hbm [shape: f32[8,256], index: 1, kind: output, shape index: {}]
  %s2 = sld [smem:[#allocation0]]
  $region18: #{tpu_custom_call.1} parent=0
    _
  %s4 = ssub.s32 1, %s2
  %s5 = scalar_select 0, %s4, %s2
  $region1: #{tpu_custom_call.1} parent=0
    #allocation2 [shape = 'u8[4096]{0}', space=vmem, size = 0x1000, scoped, tag = 'input window, operand 0, single buffered']
    #allocation3 [shape = 's32[1]{0}', space=sflag, size = 0x4, scoped, tag = 'scoped memory for tpu_custom_call.1']
    #allocation4 [shape = 's32[1]{0}', space=sflag, size = 0x4, scoped, tag = 'scoped memory for tpu_custom_call.1']
    #allocation5 [shape = 'u8[8192]{0}', space=vmem, size = 0x2000, scoped, tag = 'output window, operand 0, single buffered']
    %6 = vsyncpa [#allocation3], 0
    %7 = vsyncpa [#allocation4], 0
    // Predicated region
    $region2: #{tpu_custom_call.1} parent=1 // pred_check
      _
    $region3: #{tpu_custom_call.1} parent=1 // pred_check_branch
      %9 = sbr.rel (0) target = $region5
    $region4: #{tpu_custom_call.1} parent=1 // pred_region
      %11 = vsyncadd [#allocation3], 0
      %s13 = sshll.u32 %s0, 4
      %s14 = int_to_ptr.hbm [resolvable:$true] %s13
      %s15 = sshll.u32 [#allocation2], 4
      %s16 = int_to_ptr.vmem [resolvable:$true] %s15
      %18 = dma.hbm_to_vmem [thread:$0]  %s14, 128, %s16, [#allocation3]
    $region5: #{tpu_custom_call.1} parent=1 // pred_fallthru
      _
    // Predicated region
    $region6: #{tpu_custom_call.1} parent=1 // pred_check
      _
    $region7: #{tpu_custom_call.1} parent=1 // pred_check_branch
      %20 = sbr.rel (0) target = $region9
    $region8: #{tpu_custom_call.1} parent=1 // pred_region
      %22 = dma.done [#allocation3], 128
    $region9: #{tpu_custom_call.1} parent=1 // pred_fallthru
      _
    %v23 = vld [vmem:[#allocation2] sm:$0xff]
    %25 = vset.pattern.permute.xlu0 0
    %26 = vperm.xlu0 %25, %v23
    %v27 = vpop.permute.xlu0 %26
    %v29 = vmul.f32 %v27, %v23
    %vm30 = vcmask 130048
    %31 = vst.msk [vmem:[#allocation5] sm:$0xff] %vm30, %v29
    %32 = vset.pattern.permute.xlu0 1
    %33 = vperm.xlu0 %32, %v23
    %v34 = vpop.permute.xlu0 %33
    %v36 = vmul.f32 %v34, %v23
    %38 = vrot.lane.b32.xlu0 %v36, 16
    %v39 = vpop.permute.xlu0 %38
    %vm41 = vcmask 261248
    %42 = vst.msk [vmem:[#allocation5] sm:$0xff] %vm41, %v39
    %43 = vset.pattern.permute.xlu0 2
    %44 = vperm.xlu0 %43, %v23
    %v45 = vpop.permute.xlu0 %44
    %v47 = vmul.f32 %v45, %v23
    %49 = vrot.lane.b32.xlu0 %v47, 32
    %v50 = vpop.permute.xlu0 %49
    %vm52 = vcmask 392448
    %53 = vst.msk [vmem:[#allocation5] sm:$0xff] %vm52, %v50
    %54 = vset.pattern.permute.xlu0 3
    %55 = vperm.xlu0 %54, %v23
    %v56 = vpop.permute.xlu0 %55
    %v58 = vmul.f32 %v56, %v23
    %60 = vrot.lane.b32.xlu0 %v58, 48
    %v61 = vpop.permute.xlu0 %60
    %vm63 = vcmask 523648
    %64 = vst.msk [vmem:[#allocation5] sm:$0xff] %vm63, %v61
    %65 = vset.pattern.permute.xlu0 4
    %66 = vperm.xlu0 %65, %v23
    %v67 = vpop.permute.xlu0 %66
    %v69 = vmul.f32 %v67, %v23
    %71 = vrot.lane.b32.xlu0 %v69, 64
    %v72 = vpop.permute.xlu0 %71
    %vm74 = vcmask 654848
    %75 = vst.msk [vmem:[#allocation5] sm:$0xff] %vm74, %v72
    %76 = vset.pattern.permute.xlu0 5
    %77 = vperm.xlu0 %76, %v23
    %v78 = vpop.permute.xlu0 %77
    %v80 = vmul.f32 %v78, %v23
    %82 = vrot.lane.b32.xlu0 %v80, 80
    %v83 = vpop.permute.xlu0 %82
    %vm85 = vcmask 786048
    %86 = vst.msk [vmem:[#allocation5] sm:$0xff] %vm85, %v83
    %87 = vset.pattern.permute.xlu0 6
    %88 = vperm.xlu0 %87, %v23
    %v89 = vpop.permute.xlu0 %88
    %v91 = vmul.f32 %v89, %v23
    %93 = vrot.lane.b32.xlu0 %v91, 96
    %v94 = vpop.permute.xlu0 %93
    %vm96 = vcmask 917248
    %97 = vst.msk [vmem:[#allocation5] sm:$0xff] %vm96, %v94
    %98 = vset.pattern.permute.xlu0 7
    %99 = vperm.xlu0 %98, %v23
    %v100 = vpop.permute.xlu0 %99
    %v102 = vmul.f32 %v100, %v23
    %104 = vrot.lane.b32.xlu0 %v102, 112
    %v105 = vpop.permute.xlu0 %104
    %vm107 = vcmask 1048448
    %108 = vst.msk [vmem:[#allocation5] sm:$0xff] %vm107, %v105
    %109 = vset.pattern.permute.xlu0 8
    %110 = vperm.xlu0 %109, %v23
    %v111 = vpop.permute.xlu0 %110
    %v113 = vmul.f32 %v111, %v23
    %114 = vst.msk [vmem:[#allocation5 + $0x8] sm:$0xff] %vm30, %v113
    %115 = vset.pattern.permute.xlu0 9
    %116 = vperm.xlu0 %115, %v23
    %v117 = vpop.permute.xlu0 %116
    %v119 = vmul.f32 %v117, %v23
    %121 = vrot.lane.b32.xlu0 %v119, 16
    %v122 = vpop.permute.xlu0 %121
    %124 = vst.msk [vmem:[#allocation5 + $0x8] sm:$0xff] %vm41, %v122
    %125 = vset.pattern.permute.xlu0 10
    %126 = vperm.xlu0 %125, %v23
    %v127 = vpop.permute.xlu0 %126
    %v129 = vmul.f32 %v127, %v23
    %131 = vrot.lane.b32.xlu0 %v129, 32
    %v132 = vpop.permute.xlu0 %131
    %134 = vst.msk [vmem:[#allocation5 + $0x8] sm:$0xff] %vm52, %v132
    %135 = vset.pattern.permute.xlu0 11
    %136 = vperm.xlu0 %135, %v23
    %v137 = vpop.permute.xlu0 %136
    %v139 = vmul.f32 %v137, %v23
    %141 = vrot.lane.b32.xlu0 %v139, 48
    %v142 = vpop.permute.xlu0 %141
    %144 = vst.msk [vmem:[#allocation5 + $0x8] sm:$0xff] %vm63, %v142
    %145 = vset.pattern.permute.xlu0 12
    %146 = vperm.xlu0 %145, %v23
    %v147 = vpop.permute.xlu0 %146
    %v149 = vmul.f32 %v147, %v23
    %151 = vrot.lane.b32.xlu0 %v149, 64
    %v152 = vpop.permute.xlu0 %151
    %154 = vst.msk [vmem:[#allocation5 + $0x8] sm:$0xff] %vm74, %v152
    %155 = vset.pattern.permute.xlu0 13
    %156 = vperm.xlu0 %155, %v23
    %v157 = vpop.permute.xlu0 %156
    %v159 = vmul.f32 %v157, %v23
    %161 = vrot.lane.b32.xlu0 %v159, 80
    %v162 = vpop.permute.xlu0 %161
    %164 = vst.msk [vmem:[#allocation5 + $0x8] sm:$0xff] %vm85, %v162
    %165 = vset.pattern.permute.xlu0 14
    %166 = vperm.xlu0 %165, %v23
    %v167 = vpop.permute.xlu0 %166
    %v169 = vmul.f32 %v167, %v23
    %171 = vrot.lane.b32.xlu0 %v169, 96
    %v172 = vpop.permute.xlu0 %171
    %174 = vst.msk [vmem:[#allocation5 + $0x8] sm:$0xff] %vm96, %v172
    %175 = vset.pattern.permute.xlu0 15
    %176 = vperm.xlu0 %175, %v23
    %v177 = vpop.permute.xlu0 %176
    %v179 = vmul.f32 %v177, %v23
    %181 = vrot.lane.b32.xlu0 %v179, 112
    %v182 = vpop.permute.xlu0 %181
    %184 = vst.msk [vmem:[#allocation5 + $0x8] sm:$0xff] %vm107, %v182
    // Predicated region
    $region10: #{tpu_custom_call.1} parent=1 // pred_check
      _
    $region11: #{tpu_custom_call.1} parent=1 // pred_check_branch
      %186 = sbr.rel (0) target = $region13
    $region12: #{tpu_custom_call.1} parent=1 // pred_region
      %188 = vsyncadd [#allocation4], 0
      %s190 = sshll.u32 [#allocation5], 4
      %s191 = int_to_ptr.vmem [resolvable:$true] %s190
      %s192 = sshll.u32 %s1, 4
      %s193 = int_to_ptr.hbm [resolvable:$true] %s192
      %195 = dma.vmem_to_hbm [thread:$0]  %s191, 256, %s193, [#allocation4]
    $region13: #{tpu_custom_call.1} parent=1 // pred_fallthru
      _
    // Predicated region
    $region14: #{tpu_custom_call.1} parent=1 // pred_check
      _
    $region15: #{tpu_custom_call.1} parent=1 // pred_check_branch
      %197 = sbr.rel (0) target = $region17
    $region16: #{tpu_custom_call.1} parent=1 // pred_region
      %199 = dma.done [#allocation4], 256
    $region17: #{tpu_custom_call.1} parent=1 // pred_fallthru
      _
    %200 = vsyncpa [#allocation3], 1
    %201 = vsyncpa [#allocation4], 1

</llo_original>
